<compile_context>
chip_gen: v7x
topology: tpu7x:2x2x1
jax: 0.10.0
libtpu: 0.0.40
codegen_flags: <defaults>
</compile_context>

<pallas_src>
from functools import partial

import jax
import jax.numpy as jnp
from jax.experimental import pallas as pl
from jax.experimental.pallas import tpu as pltpu


# ----------------------------------------------------------------------------
# Single-state kernel (exact module semantics, overhead-minimized).
# ----------------------------------------------------------------------------
def _policy_kernel_single(x_s_ref, w1_ref, b1_ref, w2_ref, b2_ref, out_ref):
    # x_s_ref : SMEM (input_dim,) f32  -- state scalars
    # w1_ref  : VMEM (input_dim, H)    b1_ref : VMEM (1, H)
    # w2_ref  : VMEM (H, D_out)        b2_ref : VMEM (1, D_out)
    # out_ref : VMEM (1, D_out)
    input_dim = w1_ref.shape[0]

    # fc1 on the VPU: h = b1 + sum_k x[k] * W1[k, :]  (4 scalar-broadcast FMAs)
    h = b1_ref[...]
    for k in range(input_dim):  # input_dim is tiny & static -> fully unrolled
        h = h + x_s_ref[k] * w1_ref[pl.ds(k, 1), :]
    h = jnp.maximum(h, 0.0)  # ReLU

    # fc2 (tiny MXU dot) + softmax over the action axis (== dim=0 of the
    # original rank-1 input).
    logits = jnp.dot(h, w2_ref[...], preferred_element_type=jnp.float32) + b2_ref[...]
    m = jnp.max(logits, axis=-1, keepdims=True)
    e = jnp.exp(logits - m)
    out_ref[...] = e * pl.reciprocal(jnp.sum(e, axis=-1, keepdims=True), approx=True)


# ----------------------------------------------------------------------------
# Batched kernel (vectorized act(): per-row softmax over actions).
# ----------------------------------------------------------------------------
def _policy_kernel_batch(x_ref, w1_ref, b1_ref, w2_ref, b2_ref, out_ref):
    # x_ref: (tile_b, D_in); weights/biases whole; out_ref: (tile_b, D_out)
    h = jnp.dot(x_ref[...], w1_ref[...], preferred_element_type=jnp.float32) + b1_ref[...]
    h = jnp.maximum(h, 0.0)
    logits = jnp.dot(h, w2_ref[...], preferred_element_type=jnp.float32) + b2_ref[...]
    m = jnp.max(logits, axis=-1, keepdims=True)
    e = jnp.exp(logits - m)
    out_ref[...] = e * pl.reciprocal(jnp.sum(e, axis=-1, keepdims=True), approx=True)


# ----------------------------------------------------------------------------
# Host-side wrappers.
# ----------------------------------------------------------------------------
def prepare_params(w1, b1, w2, b2):
    """One-time prep (cast + bias reshape), hoisted out of the act() loop."""
    w1 = jnp.asarray(w1, jnp.float32)
    w2 = jnp.asarray(w2, jnp.float32)
    b1 = jnp.asarray(b1, jnp.float32).reshape(1, -1)
    b2 = jnp.asarray(b2, jnp.float32).reshape(1, -1)
    return (w1, b1, w2, b2)


@jax.jit
def policy_forward(x, params):
    """x: (input_dim,) f32 -> (output_dim,) action probabilities."""
    w1, b1, w2, b2 = params
    input_dim = w1.shape[0]
    output_dim = w2.shape[1]
    x = x.reshape(input_dim).astype(jnp.float32)

    out = pl.pallas_call(
        _policy_kernel_single,
        out_shape=jax.ShapeDtypeStruct((1, output_dim), jnp.float32),
        # No grid, no tiling: every operand is a few KB, pass it whole.
        in_specs=[
            pl.BlockSpec(memory_space=pltpu.MemorySpace.SMEM),   # state scalars
            pl.BlockSpec(memory_space=pltpu.MemorySpace.VMEM),   # w1
            pl.BlockSpec(memory_space=pltpu.MemorySpace.VMEM),   # b1
            pl.BlockSpec(memory_space=pltpu.MemorySpace.VMEM),   # w2
            pl.BlockSpec(memory_space=pltpu.MemorySpace.VMEM),   # b2
        ],
        out_specs=pl.BlockSpec(memory_space=pltpu.MemorySpace.VMEM),
    )(x, w1, b1, w2, b2)
    return out.reshape(output_dim)


@partial(jax.jit, static_argnames=("tile_b",))
def policy_forward_batch(xb, params, tile_b=128):
    """xb: (B, input_dim) -> (B, output_dim); per-row softmax over actions
    (vectorized act() path; weights stay resident in VMEM across batch tiles)."""
    w1, b1, w2, b2 = params
    B, input_dim = xb.shape
    hidden = w1.shape[1]
    output_dim = w2.shape[1]
    assert B % tile_b == 0, "batch must be a multiple of tile_b"

    return pl.pallas_call(
        _policy_kernel_batch,
        out_shape=jax.ShapeDtypeStruct((B, output_dim), jnp.float32),
        grid=(B // tile_b,),
        in_specs=[
            pl.BlockSpec((tile_b, input_dim), lambda i: (i, 0)),
            # Constant block index -> weights/biases are not re-DMA'd per step.
            pl.BlockSpec((input_dim, hidden), lambda i: (0, 0)),
            pl.BlockSpec((1, hidden), lambda i: (0, 0)),
            pl.BlockSpec((hidden, output_dim), lambda i: (0, 0)),
            pl.BlockSpec((1, output_dim), lambda i: (0, 0)),
        ],
        out_specs=pl.BlockSpec((tile_b, output_dim), lambda i: (i, 0)),
        compiler_params=pltpu.CompilerParams(
            # "parallel" batch axis -> sharded across the 2 TCs on v7x.
            dimension_semantics=("parallel",)
        ),
    )(xb.astype(jnp.float32), w1, b1, w2, b2)


def init_params(key, input_dim, hidden, output_dim):
    """Deterministic init mimicking nn.Linear's U(-1/sqrt(fan_in), 1/sqrt(fan_in))."""
    k1, k2, k3, k4 = jax.random.split(key, 4)
    bound1 = 1.0 / (input_dim ** 0.5)
    bound2 = 1.0 / (hidden ** 0.5)
    w1 = jax.random.uniform(k1, (input_dim, hidden), jnp.float32, -bound1, bound1)
    b1 = jax.random.uniform(k2, (hidden,), jnp.float32, -bound1, bound1)
    w2 = jax.random.uniform(k3, (hidden, output_dim), jnp.float32, -bound2, bound2)
    b2 = jax.random.uniform(k4, (output_dim,), jnp.float32, -bound2, bound2)
    return w1, b1, w2, b2


if __name__ == "__main__":
    # CartPole-like dims: 4-dim state, 2 actions, hidden=64 (from the module).
    input_dim, hidden, output_dim = 4, 64, 2

    key = jax.random.PRNGKey(0)
    kx, kb, kp = jax.random.split(key, 3)
    w1, b1, w2, b2 = init_params(kp, input_dim, hidden, output_dim)
    params = prepare_params(w1, b1, w2, b2)   # hoisted one-time prep

    # --- single-state path (exact module semantics: softmax over dim=0 of a
    #     rank-1 input) ---
    x = jax.random.normal(kx, (input_dim,), jnp.float32)
    probs = jax.block_until_ready(policy_forward(x, params))

    h_ref = jnp.maximum(x @ w1 + b1, 0.0)
    probs_ref = jax.nn.softmax(h_ref @ w2 + b2, axis=0)
    # Tolerance loosened for pl.reciprocal(approx=True) in the softmax denom.
    assert jnp.allclose(probs, probs_ref, atol=2e-3), (probs, probs_ref)
    assert jnp.allclose(jnp.sum(probs), 1.0, atol=2e-3)

    # --- batched path (vectorized act(); per-row softmax over actions) ---
    B, tile_b = 16, 8
    xb = jax.random.normal(kb, (B, input_dim), jnp.float32)
    probs_b = jax.block_until_ready(policy_forward_batch(xb, params, tile_b=tile_b))

    hb_ref = jnp.maximum(xb @ w1 + b1, 0.0)
    probs_b_ref = jax.nn.softmax(hb_ref @ w2 + b2, axis=-1)
    assert jnp.allclose(probs_b, probs_b_ref, atol=2e-3), (probs_b, probs_b_ref)
    assert jnp.allclose(jnp.sum(probs_b, axis=-1), jnp.ones((B,)), atol=2e-3)

    print("KERNEL_OK")
</pallas_src>

<mosaic_0001>
module attributes {stable_mosaic.version = 11 : i64} {
  func.func @_policy_kernel_single(%arg0: memref<4xf32, #tpu.memory_space<smem>>, %arg1: memref<4x64xf32, #tpu.memory_space<vmem>>, %arg2: memref<1x64xf32, #tpu.memory_space<vmem>>, %arg3: memref<64x2xf32, #tpu.memory_space<vmem>>, %arg4: memref<1x2xf32, #tpu.memory_space<vmem>>, %arg5: memref<1x2xf32, #tpu.memory_space<vmem>>) attributes {dimension_semantics = [], scalar_prefetch = 0 : i64, scratch_operands = 0 : i64, tpu.core_type = #tpu.core_type<tc>} {
    %c0 = arith.constant 0 : index
    %c0_0 = arith.constant 0 : index
    %0 = vector.load %arg2[%c0, %c0_0] : memref<1x64xf32, #tpu.memory_space<vmem>>, vector<1x64xf32>
    %c0_1 = arith.constant 0 : index
    %1 = memref.load %arg0[%c0_1] : memref<4xf32, #tpu.memory_space<smem>>
    %c0_2 = arith.constant 0 : index
    %c0_3 = arith.constant 0 : index
    %2 = vector.load %arg1[%c0_2, %c0_3] : memref<4x64xf32, #tpu.memory_space<vmem>>, vector<1x64xf32>
    %3 = vector.broadcast %1 : f32 to vector<1x64xf32>
    %4 = arith.mulf %3, %2 : vector<1x64xf32>
    %5 = arith.addf %0, %4 : vector<1x64xf32>
    %c1 = arith.constant 1 : index
    %6 = memref.load %arg0[%c1] : memref<4xf32, #tpu.memory_space<smem>>
    %c1_4 = arith.constant 1 : index
    %c0_5 = arith.constant 0 : index
    %7 = vector.load %arg1[%c1_4, %c0_5] : memref<4x64xf32, #tpu.memory_space<vmem>>, vector<1x64xf32>
    %8 = vector.broadcast %6 : f32 to vector<1x64xf32>
    %9 = arith.mulf %8, %7 : vector<1x64xf32>
    %10 = arith.addf %5, %9 : vector<1x64xf32>
    %c2 = arith.constant 2 : index
    %11 = memref.load %arg0[%c2] : memref<4xf32, #tpu.memory_space<smem>>
    %c2_6 = arith.constant 2 : index
    %c0_7 = arith.constant 0 : index
    %12 = vector.load %arg1[%c2_6, %c0_7] : memref<4x64xf32, #tpu.memory_space<vmem>>, vector<1x64xf32>
    %13 = vector.broadcast %11 : f32 to vector<1x64xf32>
    %14 = arith.mulf %13, %12 : vector<1x64xf32>
    %15 = arith.addf %10, %14 : vector<1x64xf32>
    %c3 = arith.constant 3 : index
    %16 = memref.load %arg0[%c3] : memref<4xf32, #tpu.memory_space<smem>>
    %c3_8 = arith.constant 3 : index
    %c0_9 = arith.constant 0 : index
    %17 = vector.load %arg1[%c3_8, %c0_9] : memref<4x64xf32, #tpu.memory_space<vmem>>, vector<1x64xf32>
    %18 = vector.broadcast %16 : f32 to vector<1x64xf32>
    %19 = arith.mulf %18, %17 : vector<1x64xf32>
    %20 = arith.addf %15, %19 : vector<1x64xf32>
    %cst = arith.constant 0.000000e+00 : f32
    %21 = vector.broadcast %cst : f32 to vector<1x64xf32>
    %22 = arith.maximumf %20, %21 : vector<1x64xf32>
    %c0_10 = arith.constant 0 : index
    %c0_11 = arith.constant 0 : index
    %23 = vector.load %arg3[%c0_10, %c0_11] : memref<64x2xf32, #tpu.memory_space<vmem>>, vector<64x2xf32>
    %cst_12 = arith.constant dense<0.000000e+00> : vector<1x2xf32>
    %24 = tpu.matmul %22, %23, %cst_12 {dimension_numbers = #tpu.dot_dimension_numbers<[1], [0], [0], [1], [0, 0, 1, 1], [], []>} : vector<1x64xf32>, vector<64x2xf32>, vector<1x2xf32> -> vector<1x2xf32>
    %c0_13 = arith.constant 0 : index
    %c0_14 = arith.constant 0 : index
    %25 = vector.load %arg4[%c0_13, %c0_14] : memref<1x2xf32, #tpu.memory_space<vmem>>, vector<1x2xf32>
    %26 = arith.addf %24, %25 : vector<1x2xf32>
    %cst_15 = arith.constant dense<0xFF800000> : vector<1xf32>
    %27 = vector.multi_reduction <maximumf>, %26, %cst_15 [1] : vector<1x2xf32> to vector<1xf32>
    %28 = vector.shape_cast %27 : vector<1xf32> to vector<1x1xf32>
    %29 = vector.broadcast %28 : vector<1x1xf32> to vector<1x2xf32>
    %30 = arith.subf %26, %29 : vector<1x2xf32>
    %31 = math.exp %30 : vector<1x2xf32>
    %cst_16 = arith.constant dense<0.000000e+00> : vector<1xf32>
    %32 = vector.multi_reduction <add>, %31, %cst_16 [1] : vector<1x2xf32> to vector<1xf32>
    %33 = vector.shape_cast %32 : vector<1xf32> to vector<1x1xf32>
    %34 = tpu.reciprocal %33 {approx = true} : vector<1x1xf32> -> vector<1x1xf32>
    %35 = vector.broadcast %34 : vector<1x1xf32> to vector<1x2xf32>
    %36 = arith.mulf %31, %35 : vector<1x2xf32>
    %c0_17 = arith.constant 0 : index
    %c0_18 = arith.constant 0 : index
    %37 = vector.load %arg5[%c0_17, %c0_18] : memref<1x2xf32, #tpu.memory_space<vmem>>, vector<1x2xf32>
    tpu.vector_store %arg5[%c0_17, %c0_18], %36 {strides = array<i32>} : memref<1x2xf32, #tpu.memory_space<vmem>>, vector<1x2xf32>,
    return
  }
}

</mosaic_0001>

<llo_original>
// kernel: policy_forward.1
$region0: #{policy_forward.1}
  #allocation0 [shape = 'u32[]', space=smem, size = 0x4, offset = 0x4, fixed_abs, tag = 'smem constant byte address 0x4 - core index']
  #allocation1 [shape = 'u32[144,128]{1,0:T(1,128)}', space=vmem, size = 0x12000, scoped, tag = 'internal scratch']
  %s0 = inlined_call_operand.vmem [shape: f32[4], index: 0, kind: input, shape index: {}]
  %s1 = inlined_call_operand.vmem [shape: f32[4,64], index: 1, kind: input, shape index: {}]
  %s2 = inlined_call_operand.vmem [shape: f32[1,64], index: 2, kind: input, shape index: {}]
  %s3 = inlined_call_operand.vmem [shape: f32[64,2], index: 3, kind: input, shape index: {}]
  %s4 = inlined_call_operand.vmem [shape: f32[1,2], index: 4, kind: input, shape index: {}]
  %s5 = inlined_call_operand.hbm [shape: f32[1,2], index: 5, kind: output, shape index: {}]
  %s6 = sld [smem:[#allocation0]]
  $region34: #{policy_forward.1} parent=0
    _
  %s8 = ssub.s32 1, %s6
  %s9 = scalar_select 0, %s8, %s6
  $region1: #{policy_forward.1} parent=0
    #allocation2 [shape = 'u8[512]{0}', space=smem, size = 0x200, scoped, tag = 'input window, operand 0, single buffered']
    #allocation3 [shape = 's32[1]{0}', space=sflag, size = 0x4, scoped, tag = 'scoped memory for policy_forward.1']
    #allocation4 [shape = 's32[1]{0}', space=sflag, size = 0x4, scoped, tag = 'scoped memory for policy_forward.1']
    #allocation5 [shape = 'u8[512]{0}', space=vmem, size = 0x400, scoped, tag = 'output window, operand 0, single buffered']
    %10 = vsyncpa [#allocation4], 0
    %11 = vsyncpa [#allocation3], 0
    // Predicated region
    $region2: #{policy_forward.1} parent=1 // pred_check
      _
    $region3: #{policy_forward.1} parent=1 // pred_check_branch
      %13 = sbr.rel (0) target = $region5
    $region4: #{policy_forward.1} parent=1 // pred_region
      %s15 = ssub.s32 16, 16
      %16 = vsyncadd [#allocation4], %s15
      %s18 = sshll.u32 %s0, 4
      %s19 = int_to_ptr.vmem [resolvable:$true] %s18
      %21 = dma.vmem_to_smem %s19, 16, [#allocation2], [#allocation4]
    $region5: #{policy_forward.1} parent=1 // pred_fallthru
      _
    // Predicated region
    $region6: #{policy_forward.1} parent=1 // pred_check
      _
    $region7: #{policy_forward.1} parent=1 // pred_check_branch
      %23 = sbr.rel (0) target = $region9
    $region8: #{policy_forward.1} parent=1 // pred_region
      _
    $region9: #{policy_forward.1} parent=1 // pred_fallthru
      _
    // Predicated region
    $region10: #{policy_forward.1} parent=1 // pred_check
      _
    $region11: #{policy_forward.1} parent=1 // pred_check_branch
      %25 = sbr.rel (0) target = $region13
    $region12: #{policy_forward.1} parent=1 // pred_region
      _
    $region13: #{policy_forward.1} parent=1 // pred_fallthru
      _
    // Predicated region
    $region14: #{policy_forward.1} parent=1 // pred_check
      _
    $region15: #{policy_forward.1} parent=1 // pred_check_branch
      %27 = sbr.rel (0) target = $region17
    $region16: #{policy_forward.1} parent=1 // pred_region
      _
    $region17: #{policy_forward.1} parent=1 // pred_fallthru
      _
    // Predicated region
    $region18: #{policy_forward.1} parent=1 // pred_check
      _
    $region19: #{policy_forward.1} parent=1 // pred_check_branch
      %29 = sbr.rel (0) target = $region21
    $region20: #{policy_forward.1} parent=1 // pred_region
      _
    $region21: #{policy_forward.1} parent=1 // pred_fallthru
      _
    // Predicated region
    $region22: #{policy_forward.1} parent=1 // pred_check
      _
    $region23: #{policy_forward.1} parent=1 // pred_check_branch
      %31 = sbr.rel (0) target = $region25
    $region24: #{policy_forward.1} parent=1 // pred_region
      %32 = dma.done [#allocation4], 16
    $region25: #{policy_forward.1} parent=1 // pred_fallthru
      _
    %33 = sfence
    %v34 = vld [vmem:[%s2] sm:$0x1]
    %s35 = sld [smem:[#allocation2]]
    %v36 = vld [vmem:[%s1] sm:$0x1]
    %v37 = vstv %s35
    %v38 = vmul.f32 %v37, %v36
    %v39 = vadd.f32 %v34, %v38
    %s40 = sld [smem:[#allocation2 + $0x1]]
    %v41 = vld [vmem:[%s1 + $0x1] sm:$0x1]
    %v42 = vstv %s40
    %v43 = vmul.f32 %v42, %v41
    %v44 = vadd.f32 %v39, %v43
    %s45 = sld [smem:[#allocation2 + $0x2]]
    %v46 = vld [vmem:[%s1 + $0x2] sm:$0x1]
    %v47 = vstv %s45
    %v48 = vmul.f32 %v47, %v46
    %v49 = vadd.f32 %v44, %v48
    %s50 = sld [smem:[#allocation2 + $0x3]]
    %v51 = vld [vmem:[%s1 + $0x3] sm:$0x1]
    %v52 = vstv %s50
    %v53 = vmul.f32 %v52, %v51
    %v54 = vadd.f32 %v49, %v53
    %v55 = vmax.f32 %v54, 0.0
    %v56 = vld [vmem:[%s3] sm:$0xff]
    %v57 = vld [vmem:[%s3 + $0x8] sm:$0xff]
    %v58 = vld [vmem:[%s3 + $0x10] sm:$0xff]
    %v59 = vld [vmem:[%s3 + $0x18] sm:$0xff]
    %v60 = vld [vmem:[%s3 + $0x20] sm:$0xff]
    %v61 = vld [vmem:[%s3 + $0x28] sm:$0xff]
    %v62 = vld [vmem:[%s3 + $0x30] sm:$0xff]
    %v63 = vld [vmem:[%s3 + $0x38] sm:$0xff]
    %v64 = vld [vmem:[%s4] sm:$0x1]
    %vm65 = vcmask 523264
    %v67 = vsel %vm65, %v55, 0
    %69 = vmatprep.subr.mxu0 0.0
    %70 = vmatpush1.msra.mxu0 %v56
    %71 = vmatprep.subr.mxu0 0.0
    %72 = vmatpush1.msra.mxu0 %v57
    %73 = vmatprep.subr.mxu0 0.0
    %74 = vmatpush1.msra.mxu0 %v58
    %75 = vmatprep.subr.mxu0 0.0
    %76 = vmatpush1.msra.mxu0 %v59
    %77 = vmatprep.subr.mxu0 0.0
    %78 = vmatpush1.msra.mxu0 %v60
    %79 = vmatprep.subr.mxu0 0.0
    %80 = vmatpush1.msra.mxu0 %v61
    %81 = vmatprep.subr.mxu0 0.0
    %82 = vmatpush1.msra.mxu0 %v62
    %83 = vmatprep.subr.mxu0 0.0
    %84 = vmatpush1.msra.mxu0 %v63
    %85 = vmatprep.subr.mxu0 0.0
    %86 = vmatpush1.msra.mxu0 0.0
    %87 = vmatprep.subr.mxu0 0.0
    %88 = vmatpush1.msra.mxu0 0.0
    %89 = vmatprep.subr.mxu0 0.0
    %90 = vmatpush1.msra.mxu0 0.0
    %91 = vmatprep.subr.mxu0 0.0
    %92 = vmatpush1.msra.mxu0 0.0
    %93 = vmatprep.subr.mxu0 0.0
    %94 = vmatpush1.msra.mxu0 0.0
    %95 = vmatprep.subr.mxu0 0.0
    %96 = vmatpush1.msra.mxu0 0.0
    %97 = vmatprep.subr.mxu0 0.0
    %98 = vmatpush1.msra.mxu0 0.0
    %99 = vmatprep.subr.mxu0 0.0
    %100 = vmatpush1.msra.mxu0 0.0
    %101 = vmatprep.subr.mxu0 0.0
    %102 = vmatpush1.msra.mxu0 0.0
    %103 = vmatprep.subr.mxu0 0.0
    %104 = vmatpush1.msra.mxu0 0.0
    %105 = vmatprep.subr.mxu0 0.0
    %106 = vmatpush1.msra.mxu0 0.0
    %107 = vmatprep.subr.mxu0 0.0
    %108 = vmatpush1.msra.mxu0 0.0
    %109 = vmatprep.subr.mxu0 0.0
    %110 = vmatpush1.msra.mxu0 0.0
    %111 = vmatprep.subr.mxu0 0.0
    %112 = vmatpush1.msra.mxu0 0.0
    %113 = vmatprep.subr.mxu0 0.0
    %114 = vmatpush1.msra.mxu0 0.0
    %115 = vmatprep.subr.mxu0 0.0
    %116 = vmatpush1.msra.mxu0 0.0
    %117 = vmatprep.subr.mxu0 0.0
    %118 = vmatpush1.msra.mxu0 0.0
    %119 = vmatprep.subr.mxu0 0.0
    %120 = vmatpush1.msra.mxu0 0.0
    %121 = vmatprep.subr.mxu0 0.0
    %122 = vmatpush1.msra.mxu0 0.0
    %123 = vmatprep.subr.mxu0 0.0
    %124 = vmatpush1.msra.mxu0 0.0
    %125 = vmatprep.subr.mxu0 0.0
    %126 = vmatpush1.msra.mxu0 0.0
    %127 = vmatprep.subr.mxu0 0.0
    %128 = vmatpush1.msra.mxu0 0.0
    %129 = vmatprep.subr.mxu0 0.0
    %130 = vmatpush1.msra.mxu0 0.0
    %131 = vmatprep.subr.mxu0 0.0
    %132 = vmatpush1.msra.mxu0 0.0
    %133 = vmatprep.mubr.f32.mxu0 0.0
    %134 = vmatmul.mubr.f32.gmra.mrb[0].mxu0 %v67
    %v135 = vpop.f32.mrb[0].mxu0
    %v136 = vadd.f32 %v64, %v135
    %v137 = vpop.f32.mrb[0].mxu0
    %138 = vdwg.mxu0
    %vm139 = vcmask 8192
    %v140 = vsel %vm139, %v136, -inf
    %141 = vmax.xlane.f32.xlu0 %v140
    %v142 = vpop.xlane.xlu0 %141
    %v143 = vsub.f32 %v136, %v142
    %v144 = vmul.f32 %v143, 1.442695
    %v145 = vpow.pop %v144
    %v146 = vsel %vm139, %v145, 0.0
    %147 = vadd.xlane.f32.xlu0 %v146
    %v148 = vpop.xlane.xlu0 %147
    %v149 = vrcp.pop %v148
    %v150 = vmul.f32 %v145, %v149
    %151 = vst.msk [vmem:[#allocation5] sm:$0x1] %vm139, %v150
    // Predicated region
    $region26: #{policy_forward.1} parent=1 // pred_check
      _
    $region27: #{policy_forward.1} parent=1 // pred_check_branch
      %153 = sbr.rel (0) target = $region29
    $region28: #{policy_forward.1} parent=1 // pred_region
      %s155 = ssub.s32 16, 16
      %156 = vsyncadd [#allocation3], %s155
      %s158 = sshll.u32 [#allocation5], 4
      %s159 = int_to_ptr.vmem [resolvable:$true] %s158
      %161 = dma.vmem_to_hbm [thread:$0]  %s159, 16, %s5, [#allocation3]
    $region29: #{policy_forward.1} parent=1 // pred_fallthru
      _
    // Predicated region
    $region30: #{policy_forward.1} parent=1 // pred_check
      _
    $region31: #{policy_forward.1} parent=1 // pred_check_branch
      %163 = sbr.rel (0) target = $region33
    $region32: #{policy_forward.1} parent=1 // pred_region
      %164 = dma.done [#allocation3], 16
    $region33: #{policy_forward.1} parent=1 // pred_fallthru
      _
    %165 = vsyncpa [#allocation3], 1
    %166 = vsyncpa [#allocation4], 1

</llo_original>
